<compile_context>
chip_gen: v7x
topology: tpu7x:2x2x1
jax: 0.10.0
libtpu: 0.0.40
codegen_flags: <defaults>
</compile_context>

<pallas_src>
import functools

import numpy as np
import jax
import jax.numpy as jnp
from jax.experimental import pallas as pl
from jax.experimental.pallas import tpu as pltpu


# ---------------------------------------------------------------------------
# host-side operator construction (cached per (H, W, ratio))
# ---------------------------------------------------------------------------

def _round_up(x, m):
    return ((x + m - 1) // m) * m


def _avgpool_matrix(n, r):
    """(n//r, n) matrix applying 1-D average pooling with window/stride r."""
    nd = n // r
    m = np.zeros((nd, n), dtype=np.float32)
    for i in range(nd):
        m[i, i * r:(i + 1) * r] = 1.0 / r
    return m


def _upsample_matrix(nd, r):
    """(nd*r, nd) matrix applying 1-D bilinear upsample, align_corners=False."""
    n_out = nd * r
    m = np.zeros((n_out, nd), dtype=np.float32)
    scale = 1.0 / r  # in_size / out_size
    for i in range(n_out):
        src = (i + 0.5) * scale - 0.5
        src = max(src, 0.0)                 # PyTorch clamps negative coords to 0
        i0 = min(int(np.floor(src)), nd - 1)
        i1 = min(i0 + 1, nd - 1)
        w1 = src - i0
        w0 = 1.0 - w1
        m[i, i0] += w0
        m[i, i1] += w1
    return m


@functools.lru_cache(maxsize=None)
def _blur_operators(H, W, ratio):
    A = _upsample_matrix(H // ratio, ratio) @ _avgpool_matrix(H, ratio)       # out = A @ x
    Bm = (_upsample_matrix(W // ratio, ratio) @ _avgpool_matrix(W, ratio)).T  # out = x @ Bm
    return A, Bm


@functools.lru_cache(maxsize=None)
def _blur_kron_operator(H, W, ratio):
    A, Bm = _blur_operators(H, W, ratio)
    # out_flat = x_flat @ K,  K[j*W+k, i*W+l] = A[i,j] * Bm[k,l]
    return np.kron(A.T, Bm).astype(np.float32)


# ---------------------------------------------------------------------------
# generation-aware sizing
# ---------------------------------------------------------------------------

@functools.lru_cache(maxsize=None)
def _physical_vmem_bytes():
    try:
        info = pltpu.get_tpu_info()
        return int(getattr(info, "vmem_capacity_bytes", 64 << 20))
    except Exception:
        return 64 << 20          # conservative: v7x has 64 MiB per TensorCore


def _block_target_bytes():
    # 8 MiB blocks on 128-MiB-VMEM chips (v5e/v6e), 4 MiB on v7x (64 MiB).
    return (8 << 20) if _physical_vmem_bytes() >= (100 << 20) else (4 << 20)


def _pick_tbc(bc, row_bytes, *, need_mult8):
    """Pick the batch-tile size (rows of flattened (b, c) slices per block).

    Prefers a divisor of `bc` (no host-side padding and no output slice, i.e.
    no extra HBM passes) whose block is as close to the per-block byte target
    as possible, and keeps the grid length >= 2 when that does not shrink
    blocks too much (v7x megacore sharding of the "parallel" axis).

    Returns (tbc, bc_padded); bc_padded == bc unless the padded fallback fires.
    """
    target = _block_target_bytes()
    hard_cap = 12 << 20

    def legal(d):
        return (not need_mult8) or (d % 8 == 0) or (d == bc)

    divs = [d for d in range(1, bc + 1) if bc % d == 0 and legal(d)]
    fitting = [d for d in divs if d * row_bytes <= target]
    if fitting:
        tbc = max(fitting)
    else:
        under_cap = [d for d in divs if d * row_bytes <= hard_cap]
        if under_cap:
            tbc = max(under_cap)
        else:
            # Pathological shape: padded multiple-of-8 tile (keeps VMEM sane).
            tbc = max(8, (target // row_bytes) // 8 * 8)
            return tbc, _round_up(bc, tbc)

    if bc // tbc == 1:
        smaller = [d for d in divs if d < tbc and d * row_bytes <= target]
        if smaller:
            cand = max(smaller)
            if cand * row_bytes >= (512 << 10) or bc * row_bytes <= (2 << 20):
                tbc = cand
    return tbc, bc


def _vmem_limit_bytes(block_in_bytes, block_out_bytes, op_bytes):
    # Budget: double-buffered in/out blocks + (double-buffered) resident
    # operators + headroom for compiler-internal scratch.
    need = 2 * (block_in_bytes + block_out_bytes) + 2 * op_bytes
    limit = int(need * 1.5) + (8 << 20)
    limit = max(limit, 24 << 20)
    return min(limit, int(_physical_vmem_bytes() * 0.9))


# f32 kron path has AI ~ HW/4 flop/byte; keep below the v5e compute/memory
# crossover (~80 flop/byte) -> HW <= 320, and HW must be a multiple of 128 for
# lane-dense stores -> cap at 256 (e.g. 16x16).
_FUSE_MAX_HW = 256


# ---------------------------------------------------------------------------
# kernels
# ---------------------------------------------------------------------------

def _blur_fused_kernel(k_ref, x_ref, o_ref):
    # x_ref: (TBC, HW), k_ref: (HW, HW), o_ref: (TBC, HW)
    # One lane-dense MXU matmul per grid step; unmasked vst (HW % 128 == 0).
    o_ref[...] = jnp.dot(
        x_ref[...], k_ref[...], preferred_element_type=jnp.float32
    ).astype(o_ref.dtype)


def _blur_sep_kernel(a_ref, b_ref, x_ref, o_ref):
    # a_ref: (H, H), b_ref: (W, W), x_ref/o_ref: (TBC, H, W)
    tbc, H, W = x_ref.shape
    # W-side matmul fused across the whole batched block.
    x2 = x_ref[...].reshape(tbc * H, W)
    tmp = jnp.dot(x2, b_ref[...], preferred_element_type=jnp.float32)
    tmp3 = tmp.reshape(tbc, H, W)
    # H-side contraction over the batch; this path is HBM-bound (AI=(H+W)/4),
    # so the small per-slice matmuls are hidden under the DMA.
    out = jnp.einsum('ij,bjl->bil', a_ref[...], tmp3,
                     preferred_element_type=jnp.float32)
    o_ref[...] = out.astype(o_ref.dtype)


# ---------------------------------------------------------------------------
# wrapper
# ---------------------------------------------------------------------------

@functools.partial(jax.jit, static_argnames=("ratio",))
def blur_func(x, ratio=2):
    """BlurFunc forward: x (N, C, H, W) float32 -> (N, C, H, W)."""
    B, C, H, W = x.shape
    assert H % ratio == 0 and W % ratio == 0
    BC = B * C
    HW = H * W
    dtype = x.dtype

    A_np, Bm_np = _blur_operators(H, W, ratio)

    use_fused = (HW % 128 == 0) and (HW <= _FUSE_MAX_HW)

    if use_fused:
        row_bytes = HW * 4
        tbc, bc_pad = _pick_tbc(BC, row_bytes, need_mult8=True)
        grid = (bc_pad // tbc,)

        K = jnp.asarray(_blur_kron_operator(H, W, ratio))   # (HW, HW), baked

        xf = x.reshape(BC, HW)                               # free reshape
        if bc_pad != BC:                                      # fallback only
            xf = jnp.pad(xf, ((0, bc_pad - BC), (0, 0)))

        block_bytes = tbc * HW * 4
        out = pl.pallas_call(
            _blur_fused_kernel,
            out_shape=jax.ShapeDtypeStruct((bc_pad, HW), dtype),
            grid_spec=pltpu.PrefetchScalarGridSpec(
                num_scalar_prefetch=0,
                grid=grid,
                in_specs=[
                    # K resident: constant index_map => DMA'd once.
                    pl.BlockSpec((HW, HW), lambda i: (0, 0)),
                    pl.BlockSpec((tbc, HW), lambda i: (i, 0)),
                ],
                out_specs=pl.BlockSpec((tbc, HW), lambda i: (i, 0)),
            ),
            compiler_params=pltpu.CompilerParams(
                dimension_semantics=("parallel",),
                vmem_limit_bytes=_vmem_limit_bytes(
                    block_bytes, block_bytes, HW * HW * 4)),
        )(K, xf)

        if bc_pad != BC:
            out = out[:BC]
        return out.reshape(B, C, H, W)

    # Separable path for larger spatial sizes (kron operator too big /
    # compute-bound in f32).
    row_bytes = HW * 4
    tbc, bc_pad = _pick_tbc(BC, row_bytes, need_mult8=False)
    grid = (bc_pad // tbc,)

    A = jnp.asarray(A_np)
    Bm = jnp.asarray(Bm_np)

    xf = x.reshape(BC, H, W)                                  # free reshape
    if bc_pad != BC:                                          # fallback only
        xf = jnp.pad(xf, ((0, bc_pad - BC), (0, 0), (0, 0)))

    block_bytes = tbc * HW * 4
    op_bytes = (H * H + W * W) * 4
    out = pl.pallas_call(
        _blur_sep_kernel,
        out_shape=jax.ShapeDtypeStruct((bc_pad, H, W), dtype),
        grid_spec=pltpu.PrefetchScalarGridSpec(
            num_scalar_prefetch=0,
            grid=grid,
            in_specs=[
                pl.BlockSpec((H, H), lambda i: (0, 0)),       # A, resident
                pl.BlockSpec((W, W), lambda i: (0, 0)),       # Bm, resident
                pl.BlockSpec((tbc, H, W), lambda i: (i, 0, 0)),
            ],
            out_specs=pl.BlockSpec((tbc, H, W), lambda i: (i, 0, 0)),
        ),
        compiler_params=pltpu.CompilerParams(
            dimension_semantics=("parallel",),
            vmem_limit_bytes=_vmem_limit_bytes(
                block_bytes, block_bytes, op_bytes)),
    )(A, Bm, xf)

    if bc_pad != BC:
        out = out[:BC]
    return out.reshape(B, C, H, W)


# ---------------------------------------------------------------------------
# plain-JAX reference
# ---------------------------------------------------------------------------

def _reference(x, ratio=2):
    """Plain-JAX reference: explicit avg-pool then bilinear upsample."""
    B, C, H, W = x.shape
    Hd, Wd = H // ratio, W // ratio
    d = x.reshape(B, C, Hd, ratio, Wd, ratio).mean(axis=(3, 5))
    Uh = jnp.asarray(_upsample_matrix(Hd, ratio))
    Uw = jnp.asarray(_upsample_matrix(Wd, ratio))
    return jnp.einsum("ij,bcjk,lk->bcil", Uh, d, Uw)


if __name__ == "__main__":
    key = jax.random.PRNGKey(0)

    # small-spatial case -> fused lane-dense (HW, HW) operator path
    x = jax.random.normal(key, (2, 4, 16, 16), dtype=jnp.float32)
    y = blur_func(x, ratio=2)
    jax.block_until_ready(y)
    y_ref = _reference(x, ratio=2)
    assert y.shape == x.shape, (y.shape, x.shape)
    assert jnp.allclose(y, y_ref, atol=1e-5, rtol=1e-5), \
        float(jnp.max(jnp.abs(y - y_ref)))

    # larger-spatial case -> batched separable path (HBM-bound regime)
    x2 = jax.random.normal(jax.random.PRNGKey(1), (1, 2, 64, 64),
                           dtype=jnp.float32)
    y2 = blur_func(x2, ratio=2)
    jax.block_until_ready(y2)
    y2_ref = _reference(x2, ratio=2)
    assert y2.shape == x2.shape, (y2.shape, x2.shape)
    assert jnp.allclose(y2, y2_ref, atol=1e-5, rtol=1e-5), \
        float(jnp.max(jnp.abs(y2 - y2_ref)))

    print("KERNEL_OK")
</pallas_src>

<mosaic_0001>
module attributes {stable_mosaic.version = 11 : i64} {
  func.func @_blur_fused_kernel(%arg0: i32, %arg1: memref<256x256xf32, #tpu.memory_space<vmem>>, %arg2: memref<8x256xf32, #tpu.memory_space<vmem>>, %arg3: memref<8x256xf32, #tpu.memory_space<vmem>>) attributes {dimension_semantics = [#tpu.dimension_semantics<parallel>], iteration_bounds = array<i64: 1>, scalar_prefetch = 0 : i64, scratch_operands = 0 : i64, tpu.core_type = #tpu.core_type<tc>, window_params = [{pipeline_mode = #tpu.pipeline_mode<synchronous>, transform_indices = @transform_0, window_bounds = array<i64: 256, 256>}, {transform_indices = @transform_1, window_bounds = array<i64: 8, 256>}, {transform_indices = @transform_2, window_bounds = array<i64: 8, 256>}]} {
    %c0 = arith.constant 0 : index
    %c0_0 = arith.constant 0 : index
    %0 = vector.load %arg2[%c0, %c0_0] : memref<8x256xf32, #tpu.memory_space<vmem>>, vector<8x256xf32>
    %c0_1 = arith.constant 0 : index
    %c0_2 = arith.constant 0 : index
    %1 = vector.load %arg1[%c0_1, %c0_2] : memref<256x256xf32, #tpu.memory_space<vmem>>, vector<256x256xf32>
    %cst = arith.constant dense<0.000000e+00> : vector<8x256xf32>
    %2 = tpu.matmul %0, %1, %cst {dimension_numbers = #tpu.dot_dimension_numbers<[1], [0], [0], [1], [0, 0, 1, 1], [], []>} : vector<8x256xf32>, vector<256x256xf32>, vector<8x256xf32> -> vector<8x256xf32>
    %c0_3 = arith.constant 0 : index
    %c0_4 = arith.constant 0 : index
    %3 = vector.load %arg3[%c0_3, %c0_4] : memref<8x256xf32, #tpu.memory_space<vmem>>, vector<8x256xf32>
    tpu.vector_store %arg3[%c0_3, %c0_4], %2 {strides = array<i32>} : memref<8x256xf32, #tpu.memory_space<vmem>>, vector<8x256xf32>,
    return
  }
  func.func @transform_0(%arg0: i32) -> (i32, i32) {
    %c0_i32 = arith.constant 0 : i32
    %c0_i32_0 = arith.constant 0 : i32
    %c0_i32_1 = arith.constant 0 : i32
    return %c0_i32, %c0_i32_0 : i32, i32
  }
  func.func @transform_1(%arg0: i32) -> (i32, i32) {
    %c0_i32 = arith.constant 0 : i32
    %c0_i32_0 = arith.constant 0 : i32
    return %arg0, %c0_i32 : i32, i32
  }
  func.func @transform_2(%arg0: i32) -> (i32, i32) {
    %c0_i32 = arith.constant 0 : i32
    %c0_i32_0 = arith.constant 0 : i32
    return %arg0, %c0_i32 : i32, i32
  }
}

</mosaic_0001>

<llo_original>
// kernel: blur_func.1
$region0: #{blur_func.1}
  #allocation0 [shape = 'u32[]', space=smem, size = 0x4, offset = 0x4, fixed_abs, tag = 'smem constant byte address 0x4 - core index']
  #allocation1 [shape = 'u32[144,128]{1,0:T(1,128)}', space=vmem, size = 0x12000, scoped, tag = 'internal scratch']
  %s0 = inlined_call_operand.hbm [shape: f32[256,256], index: 0, kind: input, shape index: {}]
  %s1 = inlined_call_operand.vmem [shape: f32[8,256], index: 1, kind: input, shape index: {}]
  %s2 = inlined_call_operand.vmem [shape: f32[8,256], index: 2, kind: output, shape index: {}]
  %s3 = sld [smem:[#allocation0]]
  $region22: #{blur_func.1} parent=0
    _
  %s5 = ssub.s32 1, %s3
  %s6 = scalar_select 0, %s5, %s3
  $region1: #{blur_func.1} parent=0
    #allocation2 [shape = 'u8[262144]{0}', space=vmem, size = 0x40000, scoped, tag = 'input window, operand 0, single buffered']
    #allocation3 [shape = 's32[1]{0}', space=sflag, size = 0x4, scoped, tag = 'scoped memory for blur_func.1']
    %7 = vsyncpa [#allocation3], 0
    // Predicated region
    $region2: #{blur_func.1} parent=1 // pred_check
      _
    $region3: #{blur_func.1} parent=1 // pred_check_branch
      %9 = sbr.rel (0) target = $region5
    $region4: #{blur_func.1} parent=1 // pred_region
      %s11 = ssub.s32 8192, 8192
      %12 = vsyncadd [#allocation3], %s11
      %s13 = sshll.u32 [#allocation2], 4
      %s14 = int_to_ptr.vmem [resolvable:$true] %s13
      %19 = dma.hbm_to_vmem [thread:$0]  %s0, 8192, %s14, [#allocation3], 256, 256, 16
    $region5: #{blur_func.1} parent=1 // pred_fallthru
      _
    // Predicated region
    $region6: #{blur_func.1} parent=1 // pred_check
      _
    $region7: #{blur_func.1} parent=1 // pred_check_branch
      %21 = sbr.rel (0) target = $region9
    $region8: #{blur_func.1} parent=1 // pred_region
      _
    $region9: #{blur_func.1} parent=1 // pred_fallthru
      _
    // Predicated region
    $region10: #{blur_func.1} parent=1 // pred_check
      _
    $region11: #{blur_func.1} parent=1 // pred_check_branch
      %23 = sbr.rel (0) target = $region13
    $region12: #{blur_func.1} parent=1 // pred_region
      %24 = dma.done [#allocation3], 8192
    $region13: #{blur_func.1} parent=1 // pred_fallthru
      _
    %v25 = vld [vmem:[%s1] sm:$0xff]
    %v26 = vld [vmem:[%s1 + $0x8] sm:$0xff]
    %v27 = vld [vmem:[#allocation2] sm:$0xff]
    %v28 = vld [vmem:[#allocation2 + $0x8] sm:$0xff]
    %v29 = vld [vmem:[#allocation2 + $0x10] sm:$0xff]
    %v30 = vld [vmem:[#allocation2 + $0x18] sm:$0xff]
    %v31 = vld [vmem:[#allocation2 + $0x20] sm:$0xff]
    %v32 = vld [vmem:[#allocation2 + $0x28] sm:$0xff]
    %v33 = vld [vmem:[#allocation2 + $0x30] sm:$0xff]
    %v34 = vld [vmem:[#allocation2 + $0x38] sm:$0xff]
    %v35 = vld [vmem:[#allocation2 + $0x40] sm:$0xff]
    %v36 = vld [vmem:[#allocation2 + $0x48] sm:$0xff]
    %v37 = vld [vmem:[#allocation2 + $0x50] sm:$0xff]
    %v38 = vld [vmem:[#allocation2 + $0x58] sm:$0xff]
    %v39 = vld [vmem:[#allocation2 + $0x60] sm:$0xff]
    %v40 = vld [vmem:[#allocation2 + $0x68] sm:$0xff]
    %v41 = vld [vmem:[#allocation2 + $0x70] sm:$0xff]
    %v42 = vld [vmem:[#allocation2 + $0x78] sm:$0xff]
    %v43 = vld [vmem:[#allocation2 + $0x80] sm:$0xff]
    %v44 = vld [vmem:[#allocation2 + $0x88] sm:$0xff]
    %v45 = vld [vmem:[#allocation2 + $0x90] sm:$0xff]
    %v46 = vld [vmem:[#allocation2 + $0x98] sm:$0xff]
    %v47 = vld [vmem:[#allocation2 + $0xa0] sm:$0xff]
    %v48 = vld [vmem:[#allocation2 + $0xa8] sm:$0xff]
    %v49 = vld [vmem:[#allocation2 + $0xb0] sm:$0xff]
    %v50 = vld [vmem:[#allocation2 + $0xb8] sm:$0xff]
    %v51 = vld [vmem:[#allocation2 + $0xc0] sm:$0xff]
    %v52 = vld [vmem:[#allocation2 + $0xc8] sm:$0xff]
    %v53 = vld [vmem:[#allocation2 + $0xd0] sm:$0xff]
    %v54 = vld [vmem:[#allocation2 + $0xd8] sm:$0xff]
    %v55 = vld [vmem:[#allocation2 + $0xe0] sm:$0xff]
    %v56 = vld [vmem:[#allocation2 + $0xe8] sm:$0xff]
    %v57 = vld [vmem:[#allocation2 + $0xf0] sm:$0xff]
    %v58 = vld [vmem:[#allocation2 + $0xf8] sm:$0xff]
    %v59 = vld [vmem:[#allocation2 + $0x100] sm:$0xff]
    %v60 = vld [vmem:[#allocation2 + $0x108] sm:$0xff]
    %v61 = vld [vmem:[#allocation2 + $0x110] sm:$0xff]
    %v62 = vld [vmem:[#allocation2 + $0x118] sm:$0xff]
    %v63 = vld [vmem:[#allocation2 + $0x120] sm:$0xff]
    %v64 = vld [vmem:[#allocation2 + $0x128] sm:$0xff]
    %v65 = vld [vmem:[#allocation2 + $0x130] sm:$0xff]
    %v66 = vld [vmem:[#allocation2 + $0x138] sm:$0xff]
    %v67 = vld [vmem:[#allocation2 + $0x140] sm:$0xff]
    %v68 = vld [vmem:[#allocation2 + $0x148] sm:$0xff]
    %v69 = vld [vmem:[#allocation2 + $0x150] sm:$0xff]
    %v70 = vld [vmem:[#allocation2 + $0x158] sm:$0xff]
    %v71 = vld [vmem:[#allocation2 + $0x160] sm:$0xff]
    %v72 = vld [vmem:[#allocation2 + $0x168] sm:$0xff]
    %v73 = vld [vmem:[#allocation2 + $0x170] sm:$0xff]
    %v74 = vld [vmem:[#allocation2 + $0x178] sm:$0xff]
    %v75 = vld [vmem:[#allocation2 + $0x180] sm:$0xff]
    %v76 = vld [vmem:[#allocation2 + $0x188] sm:$0xff]
    %v77 = vld [vmem:[#allocation2 + $0x190] sm:$0xff]
    %v78 = vld [vmem:[#allocation2 + $0x198] sm:$0xff]
    %v79 = vld [vmem:[#allocation2 + $0x1a0] sm:$0xff]
    %v80 = vld [vmem:[#allocation2 + $0x1a8] sm:$0xff]
    %v81 = vld [vmem:[#allocation2 + $0x1b0] sm:$0xff]
    %v82 = vld [vmem:[#allocation2 + $0x1b8] sm:$0xff]
    %v83 = vld [vmem:[#allocation2 + $0x1c0] sm:$0xff]
    %v84 = vld [vmem:[#allocation2 + $0x1c8] sm:$0xff]
    %v85 = vld [vmem:[#allocation2 + $0x1d0] sm:$0xff]
    %v86 = vld [vmem:[#allocation2 + $0x1d8] sm:$0xff]
    %v87 = vld [vmem:[#allocation2 + $0x1e0] sm:$0xff]
    %v88 = vld [vmem:[#allocation2 + $0x1e8] sm:$0xff]
    %v89 = vld [vmem:[#allocation2 + $0x1f0] sm:$0xff]
    %v90 = vld [vmem:[#allocation2 + $0x1f8] sm:$0xff]
    %91 = vmatprep.subr.mxu0 %v28
    %92 = vmatpush1.msra.mxu0 %v27
    %93 = vmatprep.subr.mxu0 %v30
    %94 = vmatpush1.msra.mxu0 %v29
    %95 = vmatprep.subr.mxu0 %v32
    %96 = vmatpush1.msra.mxu0 %v31
    %97 = vmatprep.subr.mxu0 %v34
    %98 = vmatpush1.msra.mxu0 %v33
    %99 = vmatprep.subr.mxu0 %v36
    %100 = vmatpush1.msra.mxu0 %v35
    %101 = vmatprep.subr.mxu0 %v38
    %102 = vmatpush1.msra.mxu0 %v37
    %103 = vmatprep.subr.mxu0 %v40
    %104 = vmatpush1.msra.mxu0 %v39
    %105 = vmatprep.subr.mxu0 %v42
    %106 = vmatpush1.msra.mxu0 %v41
    %107 = vmatprep.subr.mxu0 %v44
    %108 = vmatpush1.msra.mxu0 %v43
    %109 = vmatprep.subr.mxu0 %v46
    %110 = vmatpush1.msra.mxu0 %v45
    %111 = vmatprep.subr.mxu0 %v48
    %112 = vmatpush1.msra.mxu0 %v47
    %113 = vmatprep.subr.mxu0 %v50
    %114 = vmatpush1.msra.mxu0 %v49
    %115 = vmatprep.subr.mxu0 %v52
    %116 = vmatpush1.msra.mxu0 %v51
    %117 = vmatprep.subr.mxu0 %v54
    %118 = vmatpush1.msra.mxu0 %v53
    %119 = vmatprep.subr.mxu0 %v56
    %120 = vmatpush1.msra.mxu0 %v55
    %121 = vmatprep.subr.mxu0 %v58
    %122 = vmatpush1.msra.mxu0 %v57
    %123 = vmatprep.subr.mxu0 %v60
    %124 = vmatpush1.msra.mxu0 %v59
    %125 = vmatprep.subr.mxu0 %v62
    %126 = vmatpush1.msra.mxu0 %v61
    %127 = vmatprep.subr.mxu0 %v64
    %128 = vmatpush1.msra.mxu0 %v63
    %129 = vmatprep.subr.mxu0 %v66
    %130 = vmatpush1.msra.mxu0 %v65
    %131 = vmatprep.subr.mxu0 %v68
    %132 = vmatpush1.msra.mxu0 %v67
    %133 = vmatprep.subr.mxu0 %v70
    %134 = vmatpush1.msra.mxu0 %v69
    %135 = vmatprep.subr.mxu0 %v72
    %136 = vmatpush1.msra.mxu0 %v71
    %137 = vmatprep.subr.mxu0 %v74
    %138 = vmatpush1.msra.mxu0 %v73
    %139 = vmatprep.subr.mxu0 %v76
    %140 = vmatpush1.msra.mxu0 %v75
    %141 = vmatprep.subr.mxu0 %v78
    %142 = vmatpush1.msra.mxu0 %v77
    %143 = vmatprep.subr.mxu0 %v80
    %144 = vmatpush1.msra.mxu0 %v79
    %145 = vmatprep.subr.mxu0 %v82
    %146 = vmatpush1.msra.mxu0 %v81
    %147 = vmatprep.subr.mxu0 %v84
    %148 = vmatpush1.msra.mxu0 %v83
    %149 = vmatprep.subr.mxu0 %v86
    %150 = vmatpush1.msra.mxu0 %v85
    %151 = vmatprep.subr.mxu0 %v88
    %152 = vmatpush1.msra.mxu0 %v87
    %153 = vmatprep.subr.mxu0 %v90
    %154 = vmatpush1.msra.mxu0 %v89
    %155 = vmatprep.mubr.f32.mxu0 %v26
    %156 = vmatmul.mubr.f32.gmra.mrb[0].mxu0 %v25
    %v157 = vpop.f32.mrb[0].mxu0
    %v158 = vadd.f32 0.0, %v157
    %v159 = vpop.f32.mrb[0].mxu0
    %v160 = vadd.f32 0.0, %v159
    %161 = vdwg.mxu0
    %162 = vst [vmem:[%s2] sm:$0xff] %v158
    %163 = vst [vmem:[%s2 + $0x8] sm:$0xff] %v160
    // Predicated region
    $region14: #{blur_func.1} parent=1 // pred_check
      _
    $region15: #{blur_func.1} parent=1 // pred_check_branch
      %165 = sbr.rel (0) target = $region17
    $region16: #{blur_func.1} parent=1 // pred_region
      _
    $region17: #{blur_func.1} parent=1 // pred_fallthru
      _
    // Predicated region
    $region18: #{blur_func.1} parent=1 // pred_check
      _
    $region19: #{blur_func.1} parent=1 // pred_check_branch
      %167 = sbr.rel (0) target = $region21
    $region20: #{blur_func.1} parent=1 // pred_region
      _
    $region21: #{blur_func.1} parent=1 // pred_fallthru
      _
    %168 = vsyncpa [#allocation3], 1

</llo_original>
